<compile_context>
chip_gen: v5e
topology: v5e:2x2
jax: 0.10.0
libtpu: 0.0.40
codegen_flags: <defaults>
</compile_context>

<pallas_src>
import functools

import jax
import jax.numpy as jnp
from jax import lax
from jax.experimental import pallas as pl
from jax.experimental.pallas import tpu as pltpu

_LANE = 128


def _mlp_kernel(x_ref, w1_ref, b1_ref, w2_ref, b2_ref, w3t_ref, b3t_ref, o_ref):
    # Matmul stream dtype comes from the prepared weights; x is read from HBM
    # in its native f32 and cast on the VPU (review item #1).
    cdt = w1_ref.dtype
    xa = x_ref[...].astype(cdt)

    h1 = jnp.dot(xa, w1_ref[...], preferred_element_type=jnp.float32)
    # bias + ReLU in f32 (v5e has no bf16 VPU); single bf16 materialization.
    h1 = jnp.maximum(h1 + b1_ref[...], 0.0).astype(cdt)

    h2 = jnp.dot(h1, w2_ref[...], preferred_element_type=jnp.float32)
    h2 = jnp.maximum(h2 + b2_ref[...], 0.0).astype(cdt)

    # Last layer computed transposed so the output store is lane-dense:
    #   y_t[t, b] = sum_k w3t[t, k] * h2[b, k]
    # Contraction over the last dim of both operands (flash-attn QK^T form);
    # the pre-transposed / stationary side is the tiny (T, H2) weight, so no
    # runtime transpose of the big h2 operand is requested (review item #5).
    y_t = lax.dot_general(
        w3t_ref[...], h2,
        dimension_numbers=(((1,), (1,)), ((), ())),
        preferred_element_type=jnp.float32,
    )
    o_ref[...] = (y_t + b3t_ref[...]).astype(o_ref.dtype)


@functools.lru_cache(maxsize=1)
def _tensorcores_per_chip():
    """2 on v7x (2 TCs/chip), else 1 (v5e/v6e). Safe fallback to 1."""
    try:
        kind = (getattr(jax.devices()[0], "device_kind", "") or "").lower()
    except Exception:
        return 1
    return 2 if "v7" in kind else 1


def _pick_batch_tile(batch, block_b, n_cores):
    """Batch tile (== lane dim of the transposed output block).

    Single full-array block for small batches; on 1-TC chips keep a single
    block up to block_b; on v7x split the batch evenly into >=2 lane-multiple
    tiles so both TensorCores get work.
    """
    if batch <= 2 * _LANE:
        return batch                              # one full-array block
    if n_cores >= 2:
        half = -(-batch // 2)                     # ceil(batch / 2)
        half_up = -(-half // _LANE) * _LANE       # round up to lane multiple
        target = min(block_b, half_up)
    else:
        if batch <= block_b:
            return batch                          # one step; extra steps gain nothing
        target = block_b
    tile = max(_LANE, (target // _LANE) * _LANE)
    return min(tile, batch)


def prepare_params(params, *, use_bf16=True, pad_h2=True):
    """One-time (outside jit) parameter preparation (review item #7).

    params: w1 (D,H1), b1 (1,H1), w2 (H1,H2), b2 (1,H2), w3 (H2,T), b3 (1,T),
            weights stored pre-transposed as (in, out), i.e. y = x @ W + b.
    Returns a pytree to pass to tissue_classifier_forward; reuse it across
    calls instead of rebuilding per forward.
    """
    cdt = jnp.bfloat16 if use_bf16 else jnp.float32
    w1, b1, w2, b2, w3, b3 = (params["w1"], params["b1"], params["w2"],
                              params["b2"], params["w3"], params["b3"])
    h2 = w2.shape[1]
    t_out = w3.shape[1]
    if pad_h2 and h2 % _LANE != 0:
        # Lane-dense h2 (review item #8): exact-zero extra columns/rows, so
        # relu(0 + 0) = 0 and the zero rows of w3 contribute nothing.
        h2p = -(-h2 // _LANE) * _LANE
        pad = h2p - h2
        w2 = jnp.pad(w2, ((0, 0), (0, pad)))
        b2 = jnp.pad(b2.reshape(1, -1), ((0, 0), (0, pad)))
        w3 = jnp.pad(w3, ((0, pad), (0, 0)))
    return {
        "w1": w1.astype(cdt),
        "b1": b1.reshape(1, -1).astype(jnp.float32),
        "w2": w2.astype(cdt),
        "b2": b2.reshape(1, -1).astype(jnp.float32),
        "w3t": w3.T.astype(cdt),                  # (T, H2p), stationary side
        "b3t": b3.reshape(t_out, 1).astype(jnp.float32),
    }


@functools.partial(jax.jit, static_argnames=("block_b", "transposed_output"))
def tissue_classifier_forward(x, prep, block_b=4096, transposed_output=False):
    """TissueClassifier forward: x.view(-1, input_size) -> 3-layer MLP.

    prep: output of prepare_params().  Returns float32 logits, shape
    (batch, T) by default (PyTorch layout) or (T, batch) when
    transposed_output=True (skips the wrapper transpose / extra HBM pass;
    downstream argmax/indexing should then use axis 0).
    """
    w1, b1, w2, b2, w3t, b3t = (prep["w1"], prep["b1"], prep["w2"],
                                prep["b2"], prep["w3t"], prep["b3t"])
    d_in = w1.shape[0]
    t_out = w3t.shape[0]

    x2 = x.reshape(-1, d_in)          # no dtype cast here: cast is in-kernel
    batch = x2.shape[0]

    bb = _pick_batch_tile(batch, block_b, _tensorcores_per_chip())
    grid = (pl.cdiv(batch, bb),)
    # NOTE: the ragged last block reads an undefined x tail; every row of the
    # network is independent and out-of-range output columns are masked on
    # writeback, so this stays correct as long as no cross-batch reduction is
    # ever added inside the kernel.

    out_t = pl.pallas_call(
        _mlp_kernel,
        out_shape=jax.ShapeDtypeStruct((t_out, batch), jnp.float32),
        grid_spec=pltpu.PrefetchScalarGridSpec(
            num_scalar_prefetch=0,
            grid=grid,
            in_specs=[
                # activations: tile over batch rows (f32, cast happens in-kernel)
                pl.BlockSpec((bb, d_in), lambda i: (i, 0)),
                # weights / biases: whole array, same block every step
                # (VMEM-resident across the grid)
                pl.BlockSpec(w1.shape, lambda i: (0, 0)),
                pl.BlockSpec(b1.shape, lambda i: (0, 0)),
                pl.BlockSpec(w2.shape, lambda i: (0, 0)),
                pl.BlockSpec(b2.shape, lambda i: (0, 0)),
                pl.BlockSpec(w3t.shape, lambda i: (0, 0)),
                pl.BlockSpec(b3t.shape, lambda i: (0, 0)),
            ],
            # transposed output -> lane-dense stores (bb lanes, not t_out)
            out_specs=pl.BlockSpec((t_out, bb), lambda i: (0, i)),
        ),
        compiler_params=pltpu.CompilerParams(
            dimension_semantics=("parallel",),
        ),
    )(x2, w1, b1, w2, b2, w3t, b3t)

    if transposed_output:
        return out_t                  # (T, batch)
    return out_t.T                    # (batch, T) -- PyTorch layout


def init_params(key, input_size, hl1_size=128, hl2_size=64, tissue_size=2,
                dtype=jnp.float32):
    """Deterministic synthetic init matching nn.Linear parameter shapes
    (stored pre-transposed as (in, out))."""
    ks = jax.random.split(key, 6)

    def uniform(k, shape, fan_in):
        bound = 1.0 / jnp.sqrt(fan_in)
        return jax.random.uniform(k, shape, dtype=dtype, minval=-bound, maxval=bound)

    return {
        "w1": uniform(ks[0], (input_size, hl1_size), input_size),
        "b1": uniform(ks[1], (1, hl1_size), input_size),
        "w2": uniform(ks[2], (hl1_size, hl2_size), hl1_size),
        "b2": uniform(ks[3], (1, hl2_size), hl1_size),
        "w3": uniform(ks[4], (hl2_size, tissue_size), hl2_size),
        "b3": uniform(ks[5], (1, tissue_size), hl2_size),
    }


def _reference_forward(x, params, use_bf16=False):
    """Pure-JAX reference with optionally matched bf16 casting (f32 accum)."""
    cdt = jnp.bfloat16 if use_bf16 else jnp.float32
    d_in = params["w1"].shape[0]
    x2 = x.reshape(-1, d_in).astype(cdt)
    w1 = params["w1"].astype(cdt)
    w2 = params["w2"].astype(cdt)
    w3 = params["w3"].astype(cdt)
    b1 = params["b1"].astype(jnp.float32)
    b2 = params["b2"].astype(jnp.float32)
    b3 = params["b3"].astype(jnp.float32)
    h1 = jnp.maximum(jnp.dot(x2, w1, preferred_element_type=jnp.float32) + b1, 0.0)
    h2 = jnp.maximum(
        jnp.dot(h1.astype(cdt), w2, preferred_element_type=jnp.float32) + b2, 0.0)
    return jnp.dot(h2.astype(cdt), w3, preferred_element_type=jnp.float32) + b3


if __name__ == "__main__":
    key = jax.random.PRNGKey(0)
    k_x, k_p = jax.random.split(key)

    input_size = 32
    params = init_params(k_p, input_size, hl1_size=128, hl2_size=64, tissue_size=2)

    # x arrives with extra leading dims; forward does x.view(-1, input_size).
    x = jax.random.normal(k_x, (6, 80, input_size), dtype=jnp.float32)  # 480 rows

    # 1) exact float32 path vs float32 reference (single-block and tiled).
    prep_f32 = prepare_params(params, use_bf16=False)
    out_f32 = jax.block_until_ready(tissue_classifier_forward(x, prep_f32))
    ref_f32 = _reference_forward(x, params, use_bf16=False)
    assert out_f32.shape == (480, 2), out_f32.shape
    assert out_f32.dtype == jnp.float32
    assert jnp.allclose(out_f32, ref_f32, atol=1e-4, rtol=1e-4), (
        float(jnp.max(jnp.abs(out_f32 - ref_f32))))

    out_f32_tiled = jax.block_until_ready(
        tissue_classifier_forward(x, prep_f32, block_b=128))   # multi-step grid
    assert jnp.allclose(out_f32_tiled, ref_f32, atol=1e-4, rtol=1e-4), (
        float(jnp.max(jnp.abs(out_f32_tiled - ref_f32))))

    # 2) bf16 fast path (in-kernel x cast, f32 accumulation) vs matched-precision
    #    reference, and loosely vs the float32 reference (documented tolerance).
    prep_bf = prepare_params(params, use_bf16=True)
    out_bf = jax.block_until_ready(tissue_classifier_forward(x, prep_bf))
    ref_bf = _reference_forward(x, params, use_bf16=True)
    assert jnp.allclose(out_bf, ref_bf, atol=1e-2, rtol=1e-2), (
        float(jnp.max(jnp.abs(out_bf - ref_bf))))
    assert jnp.allclose(out_bf, ref_f32, atol=5e-2, rtol=5e-2), (
        float(jnp.max(jnp.abs(out_bf - ref_f32))))

    # 3) transposed (T, batch) output path: skips the wrapper .T entirely.
    out_t = jax.block_until_ready(
        tissue_classifier_forward(x, prep_bf, transposed_output=True))
    assert out_t.shape == (2, 480), out_t.shape
    assert jnp.array_equal(out_t.T, out_bf)

    # 4) tiny batch (single full-array block path), like the original test.
    x_small = jax.random.normal(k_x, (2, 4, input_size), dtype=jnp.float32)
    out_small = jax.block_until_ready(
        tissue_classifier_forward(x_small, prep_f32))
    ref_small = _reference_forward(x_small, params, use_bf16=False)
    assert out_small.shape == (8, 2), out_small.shape
    assert jnp.allclose(out_small, ref_small, atol=1e-4, rtol=1e-4), (
        float(jnp.max(jnp.abs(out_small - ref_small))))

    print("KERNEL_OK")
</pallas_src>

<mosaic_0001>
module attributes {stable_mosaic.version = 11 : i64} {
  func.func @_mlp_kernel(%arg0: i32, %arg1: memref<480x32xf32, #tpu.memory_space<vmem>>, %arg2: memref<32x128xf32, #tpu.memory_space<vmem>>, %arg3: memref<1x128xf32, #tpu.memory_space<vmem>>, %arg4: memref<128x128xf32, #tpu.memory_space<vmem>>, %arg5: memref<1x128xf32, #tpu.memory_space<vmem>>, %arg6: memref<2x128xf32, #tpu.memory_space<vmem>>, %arg7: memref<2x1xf32, #tpu.memory_space<vmem>>, %arg8: memref<2x480xf32, #tpu.memory_space<vmem>>) attributes {dimension_semantics = [#tpu.dimension_semantics<parallel>], iteration_bounds = array<i64: 1>, scalar_prefetch = 0 : i64, scratch_operands = 0 : i64, tpu.core_type = #tpu.core_type<tc>, window_params = [{transform_indices = @transform_0, window_bounds = array<i64: 480, 32>}, {pipeline_mode = #tpu.pipeline_mode<synchronous>, transform_indices = @transform_1, window_bounds = array<i64: 32, 128>}, {pipeline_mode = #tpu.pipeline_mode<synchronous>, transform_indices = @transform_2, window_bounds = array<i64: 1, 128>}, {pipeline_mode = #tpu.pipeline_mode<synchronous>, transform_indices = @transform_3, window_bounds = array<i64: 128, 128>}, {pipeline_mode = #tpu.pipeline_mode<synchronous>, transform_indices = @transform_4, window_bounds = array<i64: 1, 128>}, {pipeline_mode = #tpu.pipeline_mode<synchronous>, transform_indices = @transform_5, window_bounds = array<i64: 2, 128>}, {pipeline_mode = #tpu.pipeline_mode<synchronous>, transform_indices = @transform_6, window_bounds = array<i64: 2, 1>}, {transform_indices = @transform_7, window_bounds = array<i64: 2, 480>}]} {
    %c0 = arith.constant 0 : index
    %c0_0 = arith.constant 0 : index
    %0 = vector.load %arg1[%c0, %c0_0] : memref<480x32xf32, #tpu.memory_space<vmem>>, vector<480x32xf32>
    %c0_1 = arith.constant 0 : index
    %c0_2 = arith.constant 0 : index
    %1 = vector.load %arg2[%c0_1, %c0_2] : memref<32x128xf32, #tpu.memory_space<vmem>>, vector<32x128xf32>
    %cst = arith.constant dense<0.000000e+00> : vector<480x128xf32>
    %2 = tpu.matmul %0, %1, %cst {dimension_numbers = #tpu.dot_dimension_numbers<[1], [0], [0], [1], [0, 0, 1, 1], [], []>} : vector<480x32xf32>, vector<32x128xf32>, vector<480x128xf32> -> vector<480x128xf32>
    %c0_3 = arith.constant 0 : index
    %c0_4 = arith.constant 0 : index
    %3 = vector.load %arg3[%c0_3, %c0_4] : memref<1x128xf32, #tpu.memory_space<vmem>>, vector<1x128xf32>
    %4 = vector.broadcast %3 : vector<1x128xf32> to vector<480x128xf32>
    %5 = arith.addf %2, %4 : vector<480x128xf32>
    %cst_5 = arith.constant 0.000000e+00 : f32
    %6 = vector.broadcast %cst_5 : f32 to vector<480x128xf32>
    %7 = arith.maximumf %5, %6 : vector<480x128xf32>
    %c0_6 = arith.constant 0 : index
    %c0_7 = arith.constant 0 : index
    %8 = vector.load %arg4[%c0_6, %c0_7] : memref<128x128xf32, #tpu.memory_space<vmem>>, vector<128x128xf32>
    %cst_8 = arith.constant dense<0.000000e+00> : vector<480x128xf32>
    %9 = tpu.matmul %7, %8, %cst_8 {dimension_numbers = #tpu.dot_dimension_numbers<[1], [0], [0], [1], [0, 0, 1, 1], [], []>} : vector<480x128xf32>, vector<128x128xf32>, vector<480x128xf32> -> vector<480x128xf32>
    %c0_9 = arith.constant 0 : index
    %c0_10 = arith.constant 0 : index
    %10 = vector.load %arg5[%c0_9, %c0_10] : memref<1x128xf32, #tpu.memory_space<vmem>>, vector<1x128xf32>
    %11 = vector.broadcast %10 : vector<1x128xf32> to vector<480x128xf32>
    %12 = arith.addf %9, %11 : vector<480x128xf32>
    %cst_11 = arith.constant 0.000000e+00 : f32
    %13 = vector.broadcast %cst_11 : f32 to vector<480x128xf32>
    %14 = arith.maximumf %12, %13 : vector<480x128xf32>
    %c0_12 = arith.constant 0 : index
    %c0_13 = arith.constant 0 : index
    %15 = vector.load %arg6[%c0_12, %c0_13] : memref<2x128xf32, #tpu.memory_space<vmem>>, vector<2x128xf32>
    %cst_14 = arith.constant dense<0.000000e+00> : vector<2x480xf32>
    %16 = tpu.matmul %15, %14, %cst_14 {dimension_numbers = #tpu.dot_dimension_numbers<[1], [1], [0], [0], [0, 0, 1, 0], [], []>} : vector<2x128xf32>, vector<480x128xf32>, vector<2x480xf32> -> vector<2x480xf32>
    %c0_15 = arith.constant 0 : index
    %c0_16 = arith.constant 0 : index
    %17 = vector.load %arg7[%c0_15, %c0_16] : memref<2x1xf32, #tpu.memory_space<vmem>>, vector<2x1xf32>
    %18 = vector.broadcast %17 : vector<2x1xf32> to vector<2x480xf32>
    %19 = arith.addf %16, %18 : vector<2x480xf32>
    %c0_17 = arith.constant 0 : index
    %c0_18 = arith.constant 0 : index
    %20 = vector.load %arg8[%c0_17, %c0_18] : memref<2x480xf32, #tpu.memory_space<vmem>>, vector<2x480xf32>
    tpu.vector_store %arg8[%c0_17, %c0_18], %19 {strides = array<i32>} : memref<2x480xf32, #tpu.memory_space<vmem>>, vector<2x480xf32>,
    return
  }
  func.func @transform_0(%arg0: i32) -> (i32, i32) {
    %c0_i32 = arith.constant 0 : i32
    %c0_i32_0 = arith.constant 0 : i32
    return %arg0, %c0_i32 : i32, i32
  }
  func.func @transform_1(%arg0: i32) -> (i32, i32) {
    %c0_i32 = arith.constant 0 : i32
    %c0_i32_0 = arith.constant 0 : i32
    %c0_i32_1 = arith.constant 0 : i32
    return %c0_i32, %c0_i32_0 : i32, i32
  }
  func.func @transform_2(%arg0: i32) -> (i32, i32) {
    %c0_i32 = arith.constant 0 : i32
    %c0_i32_0 = arith.constant 0 : i32
    %c0_i32_1 = arith.constant 0 : i32
    return %c0_i32, %c0_i32_0 : i32, i32
  }
  func.func @transform_3(%arg0: i32) -> (i32, i32) {
    %c0_i32 = arith.constant 0 : i32
    %c0_i32_0 = arith.constant 0 : i32
    %c0_i32_1 = arith.constant 0 : i32
    return %c0_i32, %c0_i32_0 : i32, i32
  }
  func.func @transform_4(%arg0: i32) -> (i32, i32) {
    %c0_i32 = arith.constant 0 : i32
    %c0_i32_0 = arith.constant 0 : i32
    %c0_i32_1 = arith.constant 0 : i32
    return %c0_i32, %c0_i32_0 : i32, i32
  }
  func.func @transform_5(%arg0: i32) -> (i32, i32) {
    %c0_i32 = arith.constant 0 : i32
    %c0_i32_0 = arith.constant 0 : i32
    %c0_i32_1 = arith.constant 0 : i32
    return %c0_i32, %c0_i32_0 : i32, i32
  }
  func.func @transform_6(%arg0: i32) -> (i32, i32) {
    %c0_i32 = arith.constant 0 : i32
    %c0_i32_0 = arith.constant 0 : i32
    %c0_i32_1 = arith.constant 0 : i32
    return %c0_i32, %c0_i32_0 : i32, i32
  }
  func.func @transform_7(%arg0: i32) -> (i32, i32) {
    %c0_i32 = arith.constant 0 : i32
    %c0_i32_0 = arith.constant 0 : i32
    return %c0_i32, %arg0 : i32, i32
  }
}

</mosaic_0001>

<llo_original>
// kernel: tissue_classifier_forward.1
$region0: #{tissue_classifier_forward.1}
  #allocation0 [shape = 'u32[]', space=smem, size = 0x4, offset = 0x4, fixed_abs, tag = 'smem constant byte address 0x4 - core index']
  #allocation1 [shape = 'u32[72,128]{1,0:T(1,128)}', space=vmem, size = 0x9000, scoped, tag = 'internal scratch']
  %s0 = inlined_call_operand.vmem [shape: f32[480,32], index: 0, kind: input, shape index: {}]
  %s1 = inlined_call_operand.vmem [shape: f32[32,128], index: 1, kind: input, shape index: {}]
  %s2 = inlined_call_operand.vmem [shape: f32[1,128], index: 2, kind: input, shape index: {}]
  %s3 = inlined_call_operand.vmem [shape: f32[128,128], index: 3, kind: input, shape index: {}]
  %s4 = inlined_call_operand.vmem [shape: f32[1,128], index: 4, kind: input, shape index: {}]
  %s5 = inlined_call_operand.vmem [shape: f32[2,128], index: 5, kind: input, shape index: {}]
  %s6 = inlined_call_operand.vmem [shape: f32[2,1], index: 6, kind: input, shape index: {}]
  %s7 = inlined_call_operand.hbm [shape: f32[2,480], index: 7, kind: output, shape index: {}]
  %s8 = sld [smem:[#allocation0]]
  $region38: #{tissue_classifier_forward.1} parent=0
    _
  %s10 = ssub.s32 1, %s8
  %s11 = scalar_select 0, %s10, %s8
  $region1: #{tissue_classifier_forward.1} parent=0
    #allocation2 [shape = 'u8[4096]{0}', space=vmem, size = 0x1000, scoped, tag = 'output window, operand 0, single buffered']
    #allocation3 [shape = 's32[1]{0}', space=sflag, size = 0x4, scoped, tag = 'scoped memory for tissue_classifier_forward.1']
    %12 = vsyncpa [#allocation3], 0
    // Predicated region
    $region2: #{tissue_classifier_forward.1} parent=1 // pred_check
      _
    $region3: #{tissue_classifier_forward.1} parent=1 // pred_check_branch
      %14 = sbr.rel (0) target = $region5
    $region4: #{tissue_classifier_forward.1} parent=1 // pred_region
      _
    $region5: #{tissue_classifier_forward.1} parent=1 // pred_fallthru
      _
    // Predicated region
    $region6: #{tissue_classifier_forward.1} parent=1 // pred_check
      _
    $region7: #{tissue_classifier_forward.1} parent=1 // pred_check_branch
      %16 = sbr.rel (0) target = $region9
    $region8: #{tissue_classifier_forward.1} parent=1 // pred_region
      _
    $region9: #{tissue_classifier_forward.1} parent=1 // pred_fallthru
      _
    // Predicated region
    $region10: #{tissue_classifier_forward.1} parent=1 // pred_check
      _
    $region11: #{tissue_classifier_forward.1} parent=1 // pred_check_branch
      %18 = sbr.rel (0) target = $region13
    $region12: #{tissue_classifier_forward.1} parent=1 // pred_region
      _
    $region13: #{tissue_classifier_forward.1} parent=1 // pred_fallthru
      _
    // Predicated region
    $region14: #{tissue_classifier_forward.1} parent=1 // pred_check
      _
    $region15: #{tissue_classifier_forward.1} parent=1 // pred_check_branch
      %20 = sbr.rel (0) target = $region17
    $region16: #{tissue_classifier_forward.1} parent=1 // pred_region
      _
    $region17: #{tissue_classifier_forward.1} parent=1 // pred_fallthru
      _
    // Predicated region
    $region18: #{tissue_classifier_forward.1} parent=1 // pred_check
      _
    $region19: #{tissue_classifier_forward.1} parent=1 // pred_check_branch
      %22 = sbr.rel (0) target = $region21
    $region20: #{tissue_classifier_forward.1} parent=1 // pred_region
      _
    $region21: #{tissue_classifier_forward.1} parent=1 // pred_fallthru
      _
    // Predicated region
    $region22: #{tissue_classifier_forward.1} parent=1 // pred_check
      _
    $region23: #{tissue_classifier_forward.1} parent=1 // pred_check_branch
      %24 = sbr.rel (0) target = $region25
    $region24: #{tissue_classifier_forward.1} parent=1 // pred_region
      _
    $region25: #{tissue_classifier_forward.1} parent=1 // pred_fallthru
      _
    // Predicated region
    $region26: #{tissue_classifier_forward.1} parent=1 // pred_check
      _
    $region27: #{tissue_classifier_forward.1} parent=1 // pred_check_branch
      %26 = sbr.rel (0) target = $region29
    $region28: #{tissue_classifier_forward.1} parent=1 // pred_region
      _
    $region29: #{tissue_classifier_forward.1} parent=1 // pred_fallthru
      _
    %v27 = vld [vmem:[%s0] sm:$0xff]
    %v28 = vld [vmem:[%s0 + $0x8] sm:$0xff]
    %v29 = vld [vmem:[%s0 + $0x10] sm:$0xff]
    %v30 = vld [vmem:[%s0 + $0x18] sm:$0xff]
    %v31 = vld [vmem:[%s0 + $0x20] sm:$0xff]
    %v32 = vld [vmem:[%s0 + $0x28] sm:$0xff]
    %v33 = vld [vmem:[%s0 + $0x30] sm:$0xff]
    %v34 = vld [vmem:[%s0 + $0x38] sm:$0xff]
    %v35 = vld [vmem:[%s0 + $0x40] sm:$0xff]
    %v36 = vld [vmem:[%s0 + $0x48] sm:$0xff]
    %v37 = vld [vmem:[%s0 + $0x50] sm:$0xff]
    %v38 = vld [vmem:[%s0 + $0x58] sm:$0xff]
    %v39 = vld [vmem:[%s0 + $0x60] sm:$0xff]
    %v40 = vld [vmem:[%s0 + $0x68] sm:$0xff]
    %v41 = vld [vmem:[%s0 + $0x70] sm:$0xff]
    %v42 = vld [vmem:[%s0 + $0x78] sm:$0xff]
    %v43 = vld [vmem:[%s0 + $0x80] sm:$0xff]
    %v44 = vld [vmem:[%s0 + $0x88] sm:$0xff]
    %v45 = vld [vmem:[%s0 + $0x90] sm:$0xff]
    %v46 = vld [vmem:[%s0 + $0x98] sm:$0xff]
    %v47 = vld [vmem:[%s0 + $0xa0] sm:$0xff]
    %v48 = vld [vmem:[%s0 + $0xa8] sm:$0xff]
    %v49 = vld [vmem:[%s0 + $0xb0] sm:$0xff]
    %v50 = vld [vmem:[%s0 + $0xb8] sm:$0xff]
    %v51 = vld [vmem:[%s0 + $0xc0] sm:$0xff]
    %v52 = vld [vmem:[%s0 + $0xc8] sm:$0xff]
    %v53 = vld [vmem:[%s0 + $0xd0] sm:$0xff]
    %v54 = vld [vmem:[%s0 + $0xd8] sm:$0xff]
    %v55 = vld [vmem:[%s0 + $0xe0] sm:$0xff]
    %v56 = vld [vmem:[%s0 + $0xe8] sm:$0xff]
    %v57 = vld [vmem:[%s0 + $0xf0] sm:$0xff]
    %v58 = vld [vmem:[%s0 + $0xf8] sm:$0xff]
    %v59 = vld [vmem:[%s0 + $0x100] sm:$0xff]
    %v60 = vld [vmem:[%s0 + $0x108] sm:$0xff]
    %v61 = vld [vmem:[%s0 + $0x110] sm:$0xff]
    %v62 = vld [vmem:[%s0 + $0x118] sm:$0xff]
    %v63 = vld [vmem:[%s0 + $0x120] sm:$0xff]
    %v64 = vld [vmem:[%s0 + $0x128] sm:$0xff]
    %v65 = vld [vmem:[%s0 + $0x130] sm:$0xff]
    %v66 = vld [vmem:[%s0 + $0x138] sm:$0xff]
    %v67 = vld [vmem:[%s0 + $0x140] sm:$0xff]
    %v68 = vld [vmem:[%s0 + $0x148] sm:$0xff]
    %v69 = vld [vmem:[%s0 + $0x150] sm:$0xff]
    %v70 = vld [vmem:[%s0 + $0x158] sm:$0xff]
    %v71 = vld [vmem:[%s0 + $0x160] sm:$0xff]
    %v72 = vld [vmem:[%s0 + $0x168] sm:$0xff]
    %v73 = vld [vmem:[%s0 + $0x170] sm:$0xff]
    %v74 = vld [vmem:[%s0 + $0x178] sm:$0xff]
    %v75 = vld [vmem:[%s0 + $0x180] sm:$0xff]
    %v76 = vld [vmem:[%s0 + $0x188] sm:$0xff]
    %v77 = vld [vmem:[%s0 + $0x190] sm:$0xff]
    %v78 = vld [vmem:[%s0 + $0x198] sm:$0xff]
    %v79 = vld [vmem:[%s0 + $0x1a0] sm:$0xff]
    %v80 = vld [vmem:[%s0 + $0x1a8] sm:$0xff]
    %v81 = vld [vmem:[%s0 + $0x1b0] sm:$0xff]
    %v82 = vld [vmem:[%s0 + $0x1b8] sm:$0xff]
    %v83 = vld [vmem:[%s0 + $0x1c0] sm:$0xff]
    %v84 = vld [vmem:[%s0 + $0x1c8] sm:$0xff]
    %v85 = vld [vmem:[%s0 + $0x1d0] sm:$0xff]
    %v86 = vld [vmem:[%s0 + $0x1d8] sm:$0xff]
    %v87 = vld [vmem:[%s1] sm:$0xff]
    %v88 = vld [vmem:[%s1 + $0x8] sm:$0xff]
    %v89 = vld [vmem:[%s1 + $0x10] sm:$0xff]
    %v90 = vld [vmem:[%s1 + $0x18] sm:$0xff]
    %v91 = vld [vmem:[%s2] sm:$0x1]
    %v93 = vperm.slane %v91, 0
    %vm95 = vcmask 261120
    %v97 = vsel %vm95, %v27, 0
    %v100 = vsel %vm95, %v28, 0
    %v103 = vsel %vm95, %v29, 0
    %v106 = vsel %vm95, %v30, 0
    %v109 = vsel %vm95, %v31, 0
    %v112 = vsel %vm95, %v32, 0
    %v115 = vsel %vm95, %v33, 0
    %v118 = vsel %vm95, %v34, 0
    %v121 = vsel %vm95, %v35, 0
    %v124 = vsel %vm95, %v36, 0
    %v127 = vsel %vm95, %v37, 0
    %v130 = vsel %vm95, %v38, 0
    %v133 = vsel %vm95, %v39, 0
    %v136 = vsel %vm95, %v40, 0
    %v139 = vsel %vm95, %v41, 0
    %v142 = vsel %vm95, %v42, 0
    %v145 = vsel %vm95, %v43, 0
    %v148 = vsel %vm95, %v44, 0
    %v151 = vsel %vm95, %v45, 0
    %v154 = vsel %vm95, %v46, 0
    %v157 = vsel %vm95, %v47, 0
    %v160 = vsel %vm95, %v48, 0
    %v163 = vsel %vm95, %v49, 0
    %v166 = vsel %vm95, %v50, 0
    %v169 = vsel %vm95, %v51, 0
    %v172 = vsel %vm95, %v52, 0
    %v175 = vsel %vm95, %v53, 0
    %v178 = vsel %vm95, %v54, 0
    %v181 = vsel %vm95, %v55, 0
    %v184 = vsel %vm95, %v56, 0
    %v187 = vsel %vm95, %v57, 0
    %v190 = vsel %vm95, %v58, 0
    %v193 = vsel %vm95, %v59, 0
    %v196 = vsel %vm95, %v60, 0
    %v199 = vsel %vm95, %v61, 0
    %v202 = vsel %vm95, %v62, 0
    %v205 = vsel %vm95, %v63, 0
    %v208 = vsel %vm95, %v64, 0
    %v211 = vsel %vm95, %v65, 0
    %v214 = vsel %vm95, %v66, 0
    %v217 = vsel %vm95, %v67, 0
    %v220 = vsel %vm95, %v68, 0
    %v223 = vsel %vm95, %v69, 0
    %v226 = vsel %vm95, %v70, 0
    %v229 = vsel %vm95, %v71, 0
    %v232 = vsel %vm95, %v72, 0
    %v235 = vsel %vm95, %v73, 0
    %v238 = vsel %vm95, %v74, 0
    %v241 = vsel %vm95, %v75, 0
    %v244 = vsel %vm95, %v76, 0
    %v247 = vsel %vm95, %v77, 0
    %v250 = vsel %vm95, %v78, 0
    %v253 = vsel %vm95, %v79, 0
    %v256 = vsel %vm95, %v80, 0
    %v259 = vsel %vm95, %v81, 0
    %v262 = vsel %vm95, %v82, 0
    %v265 = vsel %vm95, %v83, 0
    %v268 = vsel %vm95, %v84, 0
    %v271 = vsel %vm95, %v85, 0
    %v274 = vsel %vm95, %v86, 0
    %276 = vmatpush.msra.mxu0 0.0
    %277 = vmatpush.msra.mxu0 0.0
    %278 = vmatpush.msra.mxu0 0.0
    %279 = vmatpush.msra.mxu0 0.0
    %280 = vmatpush.msra.mxu0 0.0
    %281 = vmatpush.msra.mxu0 0.0
    %282 = vmatpush.msra.mxu0 0.0
    %283 = vmatpush.msra.mxu0 0.0
    %284 = vmatpush.msra.mxu0 0.0
    %285 = vmatpush.msra.mxu0 0.0
    %286 = vmatpush.msra.mxu0 0.0
    %287 = vmatpush.msra.mxu0 0.0
    %288 = vmatpush.msra.mxu0 %v90
    %289 = vmatpush.msra.mxu0 %v89
    %290 = vmatpush.msra.mxu0 %v88
    %291 = vmatpush.msra.mxu0 %v87
    %292 = vmatmul.f32.gmra.mxu0 %v97
    %v293 = vpop.f32.mrf.mxu0
    %v294 = vadd.f32 %v93, %v293
    %295 = vmatmul.f32.gmra.mxu0 %v100
    %v296 = vpop.f32.mrf.mxu0
    %v297 = vadd.f32 %v93, %v296
    %298 = vmatmul.f32.gmra.mxu0 %v103
    %v299 = vpop.f32.mrf.mxu0
    %v300 = vadd.f32 %v93, %v299
    %301 = vmatmul.f32.gmra.mxu0 %v106
    %v302 = vpop.f32.mrf.mxu0
    %v303 = vadd.f32 %v93, %v302
    %304 = vmatmul.f32.gmra.mxu0 %v109
    %v305 = vpop.f32.mrf.mxu0
    %v306 = vadd.f32 %v93, %v305
    %307 = vmatmul.f32.gmra.mxu0 %v112
    %v308 = vpop.f32.mrf.mxu0
    %v309 = vadd.f32 %v93, %v308
    %310 = vmatmul.f32.gmra.mxu0 %v115
    %v311 = vpop.f32.mrf.mxu0
    %v312 = vadd.f32 %v93, %v311
    %313 = vmatmul.f32.gmra.mxu0 %v118
    %v314 = vpop.f32.mrf.mxu0
    %v315 = vadd.f32 %v93, %v314
    %316 = vmatmul.f32.gmra.mxu0 %v121
    %v317 = vpop.f32.mrf.mxu0
    %v318 = vadd.f32 %v93, %v317
    %319 = vmatmul.f32.gmra.mxu0 %v124
    %v320 = vpop.f32.mrf.mxu0
    %v321 = vadd.f32 %v93, %v320
    %322 = vmatmul.f32.gmra.mxu0 %v127
    %v323 = vpop.f32.mrf.mxu0
    %v324 = vadd.f32 %v93, %v323
    %325 = vmatmul.f32.gmra.mxu0 %v130
    %v326 = vpop.f32.mrf.mxu0
    %v327 = vadd.f32 %v93, %v326
    %328 = vmatmul.f32.gmra.mxu0 %v133
    %v329 = vpop.f32.mrf.mxu0
    %v330 = vadd.f32 %v93, %v329
    %331 = vmatmul.f32.gmra.mxu0 %v136
    %v332 = vpop.f32.mrf.mxu0
    %v333 = vadd.f32 %v93, %v332
    %334 = vmatmul.f32.gmra.mxu0 %v139
    %v335 = vpop.f32.mrf.mxu0
    %v336 = vadd.f32 %v93, %v335
    %337 = vmatmul.f32.gmra.mxu0 %v142
    %v338 = vpop.f32.mrf.mxu0
    %v339 = vadd.f32 %v93, %v338
    %340 = vmatmul.f32.gmra.mxu0 %v145
    %v341 = vpop.f32.mrf.mxu0
    %v342 = vadd.f32 %v93, %v341
    %343 = vmatmul.f32.gmra.mxu0 %v148
    %v344 = vpop.f32.mrf.mxu0
    %v345 = vadd.f32 %v93, %v344
    %346 = vmatmul.f32.gmra.mxu0 %v151
    %v347 = vpop.f32.mrf.mxu0
    %v348 = vadd.f32 %v93, %v347
    %349 = vmatmul.f32.gmra.mxu0 %v154
    %v350 = vpop.f32.mrf.mxu0
    %v351 = vadd.f32 %v93, %v350
    %352 = vmatmul.f32.gmra.mxu0 %v157
    %v353 = vpop.f32.mrf.mxu0
    %v354 = vadd.f32 %v93, %v353
    %355 = vmatmul.f32.gmra.mxu0 %v160
    %v356 = vpop.f32.mrf.mxu0
    %v357 = vadd.f32 %v93, %v356
    %358 = vmatmul.f32.gmra.mxu0 %v163
    %v359 = vpop.f32.mrf.mxu0
    %v360 = vadd.f32 %v93, %v359
    %361 = vmatmul.f32.gmra.mxu0 %v166
    %v362 = vpop.f32.mrf.mxu0
    %v363 = vadd.f32 %v93, %v362
    %364 = vmatmul.f32.gmra.mxu0 %v169
    %v365 = vpop.f32.mrf.mxu0
    %v366 = vadd.f32 %v93, %v365
    %367 = vmatmul.f32.gmra.mxu0 %v172
    %v368 = vpop.f32.mrf.mxu0
    %v369 = vadd.f32 %v93, %v368
    %370 = vmatmul.f32.gmra.mxu0 %v175
    %v371 = vpop.f32.mrf.mxu0
    %v372 = vadd.f32 %v93, %v371
    %373 = vmatmul.f32.gmra.mxu0 %v178
    %v374 = vpop.f32.mrf.mxu0
    %v375 = vadd.f32 %v93, %v374
    %376 = vmatmul.f32.gmra.mxu0 %v181
    %v377 = vpop.f32.mrf.mxu0
    %v378 = vadd.f32 %v93, %v377
    %379 = vmatmul.f32.gmra.mxu0 %v184
    %v380 = vpop.f32.mrf.mxu0
    %v381 = vadd.f32 %v93, %v380
    %382 = vmatmul.f32.gmra.mxu0 %v187
    %v383 = vpop.f32.mrf.mxu0
    %v384 = vadd.f32 %v93, %v383
    %385 = vmatmul.f32.gmra.mxu0 %v190
    %v386 = vpop.f32.mrf.mxu0
    %v387 = vadd.f32 %v93, %v386
    %388 = vmatmul.f32.gmra.mxu0 %v193
    %v389 = vpop.f32.mrf.mxu0
    %v390 = vadd.f32 %v93, %v389
    %391 = vmatmul.f32.gmra.mxu0 %v196
    %v392 = vpop.f32.mrf.mxu0
    %v393 = vadd.f32 %v93, %v392
    %394 = vmatmul.f32.gmra.mxu0 %v199
    %v395 = vpop.f32.mrf.mxu0
    %v396 = vadd.f32 %v93, %v395
    %397 = vmatmul.f32.gmra.mxu0 %v202
    %v398 = vpop.f32.mrf.mxu0
    %v399 = vadd.f32 %v93, %v398
    %400 = vmatmul.f32.gmra.mxu0 %v205
    %v401 = vpop.f32.mrf.mxu0
    %v402 = vadd.f32 %v93, %v401
    %403 = vmatmul.f32.gmra.mxu0 %v208
    %v404 = vpop.f32.mrf.mxu0
    %v405 = vadd.f32 %v93, %v404
    %406 = vmatmul.f32.gmra.mxu0 %v211
    %v407 = vpop.f32.mrf.mxu0
    %v408 = vadd.f32 %v93, %v407
    %409 = vmatmul.f32.gmra.mxu0 %v214
    %v410 = vpop.f32.mrf.mxu0
    %v411 = vadd.f32 %v93, %v410
    %412 = vmatmul.f32.gmra.mxu0 %v217
    %v413 = vpop.f32.mrf.mxu0
    %v414 = vadd.f32 %v93, %v413
    %415 = vmatmul.f32.gmra.mxu0 %v220
    %v416 = vpop.f32.mrf.mxu0
    %v417 = vadd.f32 %v93, %v416
    %418 = vmatmul.f32.gmra.mxu0 %v223
    %v419 = vpop.f32.mrf.mxu0
    %v420 = vadd.f32 %v93, %v419
    %421 = vmatmul.f32.gmra.mxu0 %v226
    %v422 = vpop.f32.mrf.mxu0
    %v423 = vadd.f32 %v93, %v422
    %424 = vmatmul.f32.gmra.mxu0 %v229
    %v425 = vpop.f32.mrf.mxu0
    %v426 = vadd.f32 %v93, %v425
    %427 = vmatmul.f32.gmra.mxu0 %v232
    %v428 = vpop.f32.mrf.mxu0
    %v429 = vadd.f32 %v93, %v428
    %430 = vmatmul.f32.gmra.mxu0 %v235
    %v431 = vpop.f32.mrf.mxu0
    %v432 = vadd.f32 %v93, %v431
    %433 = vmatmul.f32.gmra.mxu0 %v238
    %v434 = vpop.f32.mrf.mxu0
    %v435 = vadd.f32 %v93, %v434
    %436 = vmatmul.f32.gmra.mxu0 %v241
    %v437 = vpop.f32.mrf.mxu0
    %v438 = vadd.f32 %v93, %v437
    %439 = vmatmul.f32.gmra.mxu0 %v244
    %v440 = vpop.f32.mrf.mxu0
    %v441 = vadd.f32 %v93, %v440
    %442 = vmatmul.f32.gmra.mxu0 %v247
    %v443 = vpop.f32.mrf.mxu0
    %v444 = vadd.f32 %v93, %v443
    %445 = vmatmul.f32.gmra.mxu0 %v250
    %v446 = vpop.f32.mrf.mxu0
    %v447 = vadd.f32 %v93, %v446
    %448 = vmatmul.f32.gmra.mxu0 %v253
    %v449 = vpop.f32.mrf.mxu0
    %v450 = vadd.f32 %v93, %v449
    %451 = vmatmul.f32.gmra.mxu0 %v256
    %v452 = vpop.f32.mrf.mxu0
    %v453 = vadd.f32 %v93, %v452
    %454 = vmatmul.f32.gmra.mxu0 %v259
    %v455 = vpop.f32.mrf.mxu0
    %v456 = vadd.f32 %v93, %v455
    %457 = vmatmul.f32.gmra.mxu0 %v262
    %v458 = vpop.f32.mrf.mxu0
    %v459 = vadd.f32 %v93, %v458
    %460 = vmatmul.f32.gmra.mxu0 %v265
    %v461 = vpop.f32.mrf.mxu0
    %v462 = vadd.f32 %v93, %v461
    %463 = vmatmul.f32.gmra.mxu0 %v268
    %v464 = vpop.f32.mrf.mxu0
    %v465 = vadd.f32 %v93, %v464
    %466 = vmatmul.f32.gmra.mxu0 %v271
    %v467 = vpop.f32.mrf.mxu0
    %v468 = vadd.f32 %v93, %v467
    %469 = vmatmul.f32.gmra.mxu0 %v274
    %v470 = vpop.f32.mrf.mxu0
    %v471 = vadd.f32 %v93, %v470
    %472 = vdwg.mxu0
    %v473 = vmax.f32 %v294, 0.0
    %v474 = vmax.f32 %v297, 0.0
    %v475 = vmax.f32 %v300, 0.0
    %v476 = vmax.f32 %v303, 0.0
    %v477 = vmax.f32 %v306, 0.0
    %v478 = vmax.f32 %v309, 0.0
    %v479 = vmax.f32 %v312, 0.0
    %v480 = vmax.f32 %v315, 0.0
    %v481 = vmax.f32 %v318, 0.0
    %v482 = vmax.f32 %v321, 0.0
    %v483 = vmax.f32 %v324, 0.0
    %v484 = vmax.f32 %v327, 0.0
    %v485 = vmax.f32 %v330, 0.0
    %v486 = vmax.f32 %v333, 0.0
    %v487 = vmax.f32 %v336, 0.0
    %v488 = vmax.f32 %v339, 0.0
    %v489 = vmax.f32 %v342, 0.0
    %v490 = vmax.f32 %v345, 0.0
    %v491 = vmax.f32 %v348, 0.0
    %v492 = vmax.f32 %v351, 0.0
    %v493 = vmax.f32 %v354, 0.0
    %v494 = vmax.f32 %v357, 0.0
    %v495 = vmax.f32 %v360, 0.0
    %v496 = vmax.f32 %v363, 0.0
    %v497 = vmax.f32 %v366, 0.0
    %v498 = vmax.f32 %v369, 0.0
    %v499 = vmax.f32 %v372, 0.0
    %v500 = vmax.f32 %v375, 0.0
    %v501 = vmax.f32 %v378, 0.0
    %v502 = vmax.f32 %v381, 0.0
    %v503 = vmax.f32 %v384, 0.0
    %v504 = vmax.f32 %v387, 0.0
    %v505 = vmax.f32 %v390, 0.0
    %v506 = vmax.f32 %v393, 0.0
    %v507 = vmax.f32 %v396, 0.0
    %v508 = vmax.f32 %v399, 0.0
    %v509 = vmax.f32 %v402, 0.0
    %v510 = vmax.f32 %v405, 0.0
    %v511 = vmax.f32 %v408, 0.0
    %v512 = vmax.f32 %v411, 0.0
    %v513 = vmax.f32 %v414, 0.0
    %v514 = vmax.f32 %v417, 0.0
    %v515 = vmax.f32 %v420, 0.0
    %v516 = vmax.f32 %v423, 0.0
    %v517 = vmax.f32 %v426, 0.0
    %v518 = vmax.f32 %v429, 0.0
    %v519 = vmax.f32 %v432, 0.0
    %v520 = vmax.f32 %v435, 0.0
    %v521 = vmax.f32 %v438, 0.0
    %v522 = vmax.f32 %v441, 0.0
    %v523 = vmax.f32 %v444, 0.0
    %v524 = vmax.f32 %v447, 0.0
    %v525 = vmax.f32 %v450, 0.0
    %v526 = vmax.f32 %v453, 0.0
    %v527 = vmax.f32 %v456, 0.0
    %v528 = vmax.f32 %v459, 0.0
    %v529 = vmax.f32 %v462, 0.0
    %v530 = vmax.f32 %v465, 0.0
    %v531 = vmax.f32 %v468, 0.0
    %v532 = vmax.f32 %v471, 0.0
    %v533 = vld [vmem:[%s3] sm:$0xff]
    %v534 = vld [vmem:[%s3 + $0x8] sm:$0xff]
    %v535 = vld [vmem:[%s3 + $0x10] sm:$0xff]
    %v536 = vld [vmem:[%s3 + $0x18] sm:$0xff]
    %v537 = vld [vmem:[%s3 + $0x20] sm:$0xff]
    %v538 = vld [vmem:[%s3 + $0x28] sm:$0xff]
    %v539 = vld [vmem:[%s3 + $0x30] sm:$0xff]
    %v540 = vld [vmem:[%s3 + $0x38] sm:$0xff]
    %v541 = vld [vmem:[%s3 + $0x40] sm:$0xff]
    %v542 = vld [vmem:[%s3 + $0x48] sm:$0xff]
    %v543 = vld [vmem:[%s3 + $0x50] sm:$0xff]
    %v544 = vld [vmem:[%s3 + $0x58] sm:$0xff]
    %v545 = vld [vmem:[%s3 + $0x60] sm:$0xff]
    %v546 = vld [vmem:[%s3 + $0x68] sm:$0xff]
    %v547 = vld [vmem:[%s3 + $0x70] sm:$0xff]
    %v548 = vld [vmem:[%s3 + $0x78] sm:$0xff]
    %v549 = vld [vmem:[%s4] sm:$0x1]
    %v551 = vperm.slane %v549, 0
    %553 = vmatpush.msra.mxu0 %v548
    %554 = vmatpush.msra.mxu0 %v547
    %555 = vmatpush.msra.mxu0 %v546
    %556 = vmatpush.msra.mxu0 %v545
    %557 = vmatpush.msra.mxu0 %v544
    %558 = vmatpush.msra.mxu0 %v543
    %559 = vmatpush.msra.mxu0 %v542
    %560 = vmatpush.msra.mxu0 %v541
    %561 = vmatpush.msra.mxu0 %v540
    %562 = vmatpush.msra.mxu0 %v539
    %563 = vmatpush.msra.mxu0 %v538
    %564 = vmatpush.msra.mxu0 %v537
    %565 = vmatpush.msra.mxu0 %v536
    %566 = vmatpush.msra.mxu0 %v535
    %567 = vmatpush.msra.mxu0 %v534
    %568 = vmatpush.msra.mxu0 %v533
    %569 = vmatmul.f32.gmra.mxu0 %v473
    %v570 = vpop.f32.mrf.mxu0
    %v571 = vadd.f32 %v551, %v570
    %572 = vmatmul.f32.gmra.mxu0 %v474
    %v573 = vpop.f32.mrf.mxu0
    %v574 = vadd.f32 %v551, %v573
    %575 = vmatmul.f32.gmra.mxu0 %v475
    %v576 = vpop.f32.mrf.mxu0
    %v577 = vadd.f32 %v551, %v576
    %578 = vmatmul.f32.gmra.mxu0 %v476
    %v579 = vpop.f32.mrf.mxu0
    %v580 = vadd.f32 %v551, %v579
    %581 = vmatmul.f32.gmra.mxu0 %v477
    %v582 = vpop.f32.mrf.mxu0
    %v583 = vadd.f32 %v551, %v582
    %584 = vmatmul.f32.gmra.mxu0 %v478
    %v585 = vpop.f32.mrf.mxu0
    %v586 = vadd.f32 %v551, %v585
    %587 = vmatmul.f32.gmra.mxu0 %v479
    %v588 = vpop.f32.mrf.mxu0
    %v589 = vadd.f32 %v551, %v588
    %590 = vmatmul.f32.gmra.mxu0 %v480
    %v591 = vpop.f32.mrf.mxu0
    %v592 = vadd.f32 %v551, %v591
    %593 = vmatmul.f32.gmra.mxu0 %v481
    %v594 = vpop.f32.mrf.mxu0
    %v595 = vadd.f32 %v551, %v594
    %596 = vmatmul.f32.gmra.mxu0 %v482
    %v597 = vpop.f32.mrf.mxu0
    %v598 = vadd.f32 %v551, %v597
    %599 = vmatmul.f32.gmra.mxu0 %v483
    %v600 = vpop.f32.mrf.mxu0
    %v601 = vadd.f32 %v551, %v600
    %602 = vmatmul.f32.gmra.mxu0 %v484
    %v603 = vpop.f32.mrf.mxu0
    %v604 = vadd.f32 %v551, %v603
    %605 = vmatmul.f32.gmra.mxu0 %v485
    %v606 = vpop.f32.mrf.mxu0
    %v607 = vadd.f32 %v551, %v606
    %608 = vmatmul.f32.gmra.mxu0 %v486
    %v609 = vpop.f32.mrf.mxu0
    %v610 = vadd.f32 %v551, %v609
    %611 = vmatmul.f32.gmra.mxu0 %v487
    %v612 = vpop.f32.mrf.mxu0
    %v613 = vadd.f32 %v551, %v612
    %614 = vmatmul.f32.gmra.mxu0 %v488
    %v615 = vpop.f32.mrf.mxu0
    %v616 = vadd.f32 %v551, %v615
    %617 = vmatmul.f32.gmra.mxu0 %v489
    %v618 = vpop.f32.mrf.mxu0
    %v619 = vadd.f32 %v551, %v618
    %620 = vmatmul.f32.gmra.mxu0 %v490
    %v621 = vpop.f32.mrf.mxu0
    %v622 = vadd.f32 %v551, %v621
    %623 = vmatmul.f32.gmra.mxu0 %v491
    %v624 = vpop.f32.mrf.mxu0
    %v625 = vadd.f32 %v551, %v624
    %626 = vmatmul.f32.gmra.mxu0 %v492
    %v627 = vpop.f32.mrf.mxu0
    %v628 = vadd.f32 %v551, %v627
    %629 = vmatmul.f32.gmra.mxu0 %v493
    %v630 = vpop.f32.mrf.mxu0
    %v631 = vadd.f32 %v551, %v630
    %632 = vmatmul.f32.gmra.mxu0 %v494
    %v633 = vpop.f32.mrf.mxu0
    %v634 = vadd.f32 %v551, %v633
    %635 = vmatmul.f32.gmra.mxu0 %v495
    %v636 = vpop.f32.mrf.mxu0
    %v637 = vadd.f32 %v551, %v636
    %638 = vmatmul.f32.gmra.mxu0 %v496
    %v639 = vpop.f32.mrf.mxu0
    %v640 = vadd.f32 %v551, %v639
    %641 = vmatmul.f32.gmra.mxu0 %v497
    %v642 = vpop.f32.mrf.mxu0
    %v643 = vadd.f32 %v551, %v642
    %644 = vmatmul.f32.gmra.mxu0 %v498
    %v645 = vpop.f32.mrf.mxu0
    %v646 = vadd.f32 %v551, %v645
    %647 = vmatmul.f32.gmra.mxu0 %v499
    %v648 = vpop.f32.mrf.mxu0
    %v649 = vadd.f32 %v551, %v648
    %650 = vmatmul.f32.gmra.mxu0 %v500
    %v651 = vpop.f32.mrf.mxu0
    %v652 = vadd.f32 %v551, %v651
    %653 = vmatmul.f32.gmra.mxu0 %v501
    %v654 = vpop.f32.mrf.mxu0
    %v655 = vadd.f32 %v551, %v654
    %656 = vmatmul.f32.gmra.mxu0 %v502
    %v657 = vpop.f32.mrf.mxu0
    %v658 = vadd.f32 %v551, %v657
    %659 = vmatmul.f32.gmra.mxu0 %v503
    %v660 = vpop.f32.mrf.mxu0
    %v661 = vadd.f32 %v551, %v660
    %662 = vmatmul.f32.gmra.mxu0 %v504
    %v663 = vpop.f32.mrf.mxu0
    %v664 = vadd.f32 %v551, %v663
    %665 = vmatmul.f32.gmra.mxu0 %v505
    %v666 = vpop.f32.mrf.mxu0
    %v667 = vadd.f32 %v551, %v666
    %668 = vmatmul.f32.gmra.mxu0 %v506
    %v669 = vpop.f32.mrf.mxu0
    %v670 = vadd.f32 %v551, %v669
    %671 = vmatmul.f32.gmra.mxu0 %v507
    %v672 = vpop.f32.mrf.mxu0
    %v673 = vadd.f32 %v551, %v672
    %674 = vmatmul.f32.gmra.mxu0 %v508
    %v675 = vpop.f32.mrf.mxu0
    %v676 = vadd.f32 %v551, %v675
    %677 = vmatmul.f32.gmra.mxu0 %v509
    %v678 = vpop.f32.mrf.mxu0
    %v679 = vadd.f32 %v551, %v678
    %680 = vmatmul.f32.gmra.mxu0 %v510
    %v681 = vpop.f32.mrf.mxu0
    %v682 = vadd.f32 %v551, %v681
    %683 = vmatmul.f32.gmra.mxu0 %v511
    %v684 = vpop.f32.mrf.mxu0
    %v685 = vadd.f32 %v551, %v684
    %686 = vmatmul.f32.gmra.mxu0 %v512
    %v687 = vpop.f32.mrf.mxu0
    %v688 = vadd.f32 %v551, %v687
    %689 = vmatmul.f32.gmra.mxu0 %v513
    %v690 = vpop.f32.mrf.mxu0
    %v691 = vadd.f32 %v551, %v690
    %692 = vmatmul.f32.gmra.mxu0 %v514
    %v693 = vpop.f32.mrf.mxu0
    %v694 = vadd.f32 %v551, %v693
    %695 = vmatmul.f32.gmra.mxu0 %v515
    %v696 = vpop.f32.mrf.mxu0
    %v697 = vadd.f32 %v551, %v696
    %698 = vmatmul.f32.gmra.mxu0 %v516
    %v699 = vpop.f32.mrf.mxu0
    %v700 = vadd.f32 %v551, %v699
    %701 = vmatmul.f32.gmra.mxu0 %v517
    %v702 = vpop.f32.mrf.mxu0
    %v703 = vadd.f32 %v551, %v702
    %704 = vmatmul.f32.gmra.mxu0 %v518
    %v705 = vpop.f32.mrf.mxu0
    %v706 = vadd.f32 %v551, %v705
    %707 = vmatmul.f32.gmra.mxu0 %v519
    %v708 = vpop.f32.mrf.mxu0
    %v709 = vadd.f32 %v551, %v708
    %710 = vmatmul.f32.gmra.mxu0 %v520
    %v711 = vpop.f32.mrf.mxu0
    %v712 = vadd.f32 %v551, %v711
    %713 = vmatmul.f32.gmra.mxu0 %v521
    %v714 = vpop.f32.mrf.mxu0
    %v715 = vadd.f32 %v551, %v714
    %716 = vmatmul.f32.gmra.mxu0 %v522
    %v717 = vpop.f32.mrf.mxu0
    %v718 = vadd.f32 %v551, %v717
    %719 = vmatmul.f32.gmra.mxu0 %v523
    %v720 = vpop.f32.mrf.mxu0
    %v721 = vadd.f32 %v551, %v720
    %722 = vmatmul.f32.gmra.mxu0 %v524
    %v723 = vpop.f32.mrf.mxu0
    %v724 = vadd.f32 %v551, %v723
    %725 = vmatmul.f32.gmra.mxu0 %v525
    %v726 = vpop.f32.mrf.mxu0
    %v727 = vadd.f32 %v551, %v726
    %728 = vmatmul.f32.gmra.mxu0 %v526
    %v729 = vpop.f32.mrf.mxu0
    %v730 = vadd.f32 %v551, %v729
    %731 = vmatmul.f32.gmra.mxu0 %v527
    %v732 = vpop.f32.mrf.mxu0
    %v733 = vadd.f32 %v551, %v732
    %734 = vmatmul.f32.gmra.mxu0 %v528
    %v735 = vpop.f32.mrf.mxu0
    %v736 = vadd.f32 %v551, %v735
    %737 = vmatmul.f32.gmra.mxu0 %v529
    %v738 = vpop.f32.mrf.mxu0
    %v739 = vadd.f32 %v551, %v738
    %740 = vmatmul.f32.gmra.mxu0 %v530
    %v741 = vpop.f32.mrf.mxu0
    %v742 = vadd.f32 %v551, %v741
    %743 = vmatmul.f32.gmra.mxu0 %v531
    %v744 = vpop.f32.mrf.mxu0
    %v745 = vadd.f32 %v551, %v744
    %746 = vmatmul.f32.gmra.mxu0 %v532
    %v747 = vpop.f32.mrf.mxu0
    %v748 = vadd.f32 %v551, %v747
    %749 = vdwg.mxu0
    %v750 = vmax.f32 %v571, 0.0
    %v751 = vmax.f32 %v574, 0.0
    %v752 = vmax.f32 %v577, 0.0
    %v753 = vmax.f32 %v580, 0.0
    %v754 = vmax.f32 %v583, 0.0
    %v755 = vmax.f32 %v586, 0.0
    %v756 = vmax.f32 %v589, 0.0
    %v757 = vmax.f32 %v592, 0.0
    %v758 = vmax.f32 %v595, 0.0
    %v759 = vmax.f32 %v598, 0.0
    %v760 = vmax.f32 %v601, 0.0
    %v761 = vmax.f32 %v604, 0.0
    %v762 = vmax.f32 %v607, 0.0
    %v763 = vmax.f32 %v610, 0.0
    %v764 = vmax.f32 %v613, 0.0
    %v765 = vmax.f32 %v616, 0.0
    %v766 = vmax.f32 %v619, 0.0
    %v767 = vmax.f32 %v622, 0.0
    %v768 = vmax.f32 %v625, 0.0
    %v769 = vmax.f32 %v628, 0.0
    %v770 = vmax.f32 %v631, 0.0
    %v771 = vmax.f32 %v634, 0.0
    %v772 = vmax.f32 %v637, 0.0
    %v773 = vmax.f32 %v640, 0.0
    %v774 = vmax.f32 %v643, 0.0
    %v775 = vmax.f32 %v646, 0.0
    %v776 = vmax.f32 %v649, 0.0
    %v777 = vmax.f32 %v652, 0.0
    %v778 = vmax.f32 %v655, 0.0
    %v779 = vmax.f32 %v658, 0.0
    %v780 = vmax.f32 %v661, 0.0
    %v781 = vmax.f32 %v664, 0.0
    %v782 = vmax.f32 %v667, 0.0
    %v783 = vmax.f32 %v670, 0.0
    %v784 = vmax.f32 %v673, 0.0
    %v785 = vmax.f32 %v676, 0.0
    %v786 = vmax.f32 %v679, 0.0
    %v787 = vmax.f32 %v682, 0.0
    %v788 = vmax.f32 %v685, 0.0
    %v789 = vmax.f32 %v688, 0.0
    %v790 = vmax.f32 %v691, 0.0
    %v791 = vmax.f32 %v694, 0.0
    %v792 = vmax.f32 %v697, 0.0
    %v793 = vmax.f32 %v700, 0.0
    %v794 = vmax.f32 %v703, 0.0
    %v795 = vmax.f32 %v706, 0.0
    %v796 = vmax.f32 %v709, 0.0
    %v797 = vmax.f32 %v712, 0.0
    %v798 = vmax.f32 %v715, 0.0
    %v799 = vmax.f32 %v718, 0.0
    %v800 = vmax.f32 %v721, 0.0
    %v801 = vmax.f32 %v724, 0.0
    %v802 = vmax.f32 %v727, 0.0
    %v803 = vmax.f32 %v730, 0.0
    %v804 = vmax.f32 %v733, 0.0
    %v805 = vmax.f32 %v736, 0.0
    %v806 = vmax.f32 %v739, 0.0
    %v807 = vmax.f32 %v742, 0.0
    %v808 = vmax.f32 %v745, 0.0
    %v809 = vmax.f32 %v748, 0.0
    %v810 = vld [vmem:[%s5] sm:$0x3]
    %v811 = vld [vmem:[%s6] sm:$0x3]
    %813 = vset.pattern.permute.xlu0 0
    %814 = vperm.xlu0 %813, %v811
    %v815 = vpop.permute.xlu0 %814
    %817 = vmatpush.xpose.msra.mxu0 %v765
    %818 = vmatpush.xpose.msra.mxu0 %v764
    %819 = vmatpush.xpose.msra.mxu0 %v763
    %820 = vmatpush.xpose.msra.mxu0 %v762
    %821 = vmatpush.xpose.msra.mxu0 %v761
    %822 = vmatpush.xpose.msra.mxu0 %v760
    %823 = vmatpush.xpose.msra.mxu0 %v759
    %824 = vmatpush.xpose.msra.mxu0 %v758
    %825 = vmatpush.xpose.msra.mxu0 %v757
    %826 = vmatpush.xpose.msra.mxu0 %v756
    %827 = vmatpush.xpose.msra.mxu0 %v755
    %828 = vmatpush.xpose.msra.mxu0 %v754
    %829 = vmatpush.xpose.msra.mxu0 %v753
    %830 = vmatpush.xpose.msra.mxu0 %v752
    %831 = vmatpush.xpose.msra.mxu0 %v751
    %832 = vmatpush.xpose.msra.mxu0 %v750
    %833 = vmatmul.f32.gmra.mxu0 %v810
    %v834 = vpop.f32.mrf.mxu0
    %v835 = vadd.f32 %v815, %v834
    %836 = vdwg.mxu0
    %837 = vmatpush.xpose.msra.mxu0 %v781
    %838 = vmatpush.xpose.msra.mxu0 %v780
    %839 = vmatpush.xpose.msra.mxu0 %v779
    %840 = vmatpush.xpose.msra.mxu0 %v778
    %841 = vmatpush.xpose.msra.mxu0 %v777
    %842 = vmatpush.xpose.msra.mxu0 %v776
    %843 = vmatpush.xpose.msra.mxu0 %v775
    %844 = vmatpush.xpose.msra.mxu0 %v774
    %845 = vmatpush.xpose.msra.mxu0 %v773
    %846 = vmatpush.xpose.msra.mxu0 %v772
    %847 = vmatpush.xpose.msra.mxu0 %v771
    %848 = vmatpush.xpose.msra.mxu0 %v770
    %849 = vmatpush.xpose.msra.mxu0 %v769
    %850 = vmatpush.xpose.msra.mxu0 %v768
    %851 = vmatpush.xpose.msra.mxu0 %v767
    %852 = vmatpush.xpose.msra.mxu0 %v766
    %853 = vmatmul.f32.gmra.mxu0 %v810
    %v854 = vpop.f32.mrf.mxu0
    %v855 = vadd.f32 %v815, %v854
    %856 = vdwg.mxu0
    %857 = vmatpush.xpose.msra.mxu0 %v797
    %858 = vmatpush.xpose.msra.mxu0 %v796
    %859 = vmatpush.xpose.msra.mxu0 %v795
    %860 = vmatpush.xpose.msra.mxu0 %v794
    %861 = vmatpush.xpose.msra.mxu0 %v793
    %862 = vmatpush.xpose.msra.mxu0 %v792
    %863 = vmatpush.xpose.msra.mxu0 %v791
    %864 = vmatpush.xpose.msra.mxu0 %v790
    %865 = vmatpush.xpose.msra.mxu0 %v789
    %866 = vmatpush.xpose.msra.mxu0 %v788
    %867 = vmatpush.xpose.msra.mxu0 %v787
    %868 = vmatpush.xpose.msra.mxu0 %v786
    %869 = vmatpush.xpose.msra.mxu0 %v785
    %870 = vmatpush.xpose.msra.mxu0 %v784
    %871 = vmatpush.xpose.msra.mxu0 %v783
    %872 = vmatpush.xpose.msra.mxu0 %v782
    %873 = vmatmul.f32.gmra.mxu0 %v810
    %v874 = vpop.f32.mrf.mxu0
    %v875 = vadd.f32 %v815, %v874
    %876 = vdwg.mxu0
    %877 = vmatpush.xpose.msra.mxu0 0.0
    %878 = vmatpush.xpose.msra.mxu0 0.0
    %879 = vmatpush.xpose.msra.mxu0 0.0
    %880 = vmatpush.xpose.msra.mxu0 0.0
    %881 = vmatpush.xpose.msra.mxu0 %v809
    %882 = vmatpush.xpose.msra.mxu0 %v808
    %883 = vmatpush.xpose.msra.mxu0 %v807
    %884 = vmatpush.xpose.msra.mxu0 %v806
    %885 = vmatpush.xpose.msra.mxu0 %v805
    %886 = vmatpush.xpose.msra.mxu0 %v804
    %887 = vmatpush.xpose.msra.mxu0 %v803
    %888 = vmatpush.xpose.msra.mxu0 %v802
    %889 = vmatpush.xpose.msra.mxu0 %v801
    %890 = vmatpush.xpose.msra.mxu0 %v800
    %891 = vmatpush.xpose.msra.mxu0 %v799
    %892 = vmatpush.xpose.msra.mxu0 %v798
    %893 = vmatmul.f32.gmra.mxu0 %v810
    %v894 = vpop.f32.mrf.mxu0
    %v895 = vadd.f32 %v815, %v894
    %896 = vdwg.mxu0
    %v901 = vrot.slane %v855, 6
    %v902 = vrot.slane %v875, 4
    %v903 = vrot.slane %v895, 2
    %vm904 = vcmask 1041408
    %v905 = vsel %vm904, %v835, %v901
    %vm906 = vcmask 1045508
    %v907 = vsel %vm906, %v902, %v903
    %vm908 = vcmask 1043456
    %v909 = vsel %vm908, %v905, %v907
    %vm911 = vcmask 1043458
    %vm912 = vmor %vm911, %vm904
    %vm913 = vmor %vm906, %vm912
    %vm914 = vcmask 785414
    %vm915 = vmor %vm914, %vm913
    %916 = vst.msk [vmem:[#allocation2] sm:$0xff] %vm915, %v909
    // Predicated region
    $region30: #{tissue_classifier_forward.1} parent=1 // pred_check
      _
    $region31: #{tissue_classifier_forward.1} parent=1 // pred_check_branch
      %918 = sbr.rel (0) target = $region33
    $region32: #{tissue_classifier_forward.1} parent=1 // pred_region
      %920 = vsyncadd [#allocation3], 0
      %s922 = sshll.u32 [#allocation2], 4
      %s923 = int_to_ptr.vmem [resolvable:$true] %s922
      %s924 = sshll.u32 %s7, 4
      %s925 = int_to_ptr.hbm [resolvable:$true] %s924
      %927 = dma.vmem_to_hbm [thread:$0]  %s923, 128, %s925, [#allocation3]
    $region33: #{tissue_classifier_forward.1} parent=1 // pred_fallthru
      _
    // Predicated region
    $region34: #{tissue_classifier_forward.1} parent=1 // pred_check
      _
    $region35: #{tissue_classifier_forward.1} parent=1 // pred_check_branch
      %929 = sbr.rel (0) target = $region37
    $region36: #{tissue_classifier_forward.1} parent=1 // pred_region
      %931 = dma.done [#allocation3], 128
    $region37: #{tissue_classifier_forward.1} parent=1 // pred_fallthru
      _
    %932 = vsyncpa [#allocation3], 1

</llo_original>
